<compile_context>
chip_gen: v7x
topology: tpu7x:2x2x1
jax: 0.10.0
libtpu: 0.0.40
codegen_flags: <defaults>
</compile_context>

<pallas_src>
import math

import jax
import jax.numpy as jnp
from jax.experimental import pallas as pl
from jax.experimental.pallas import tpu as pltpu


def build_pe_table(d_model: int, max_len: int = 300) -> jnp.ndarray:
    """Deterministic sinusoidal table, identical to the PyTorch __init__."""
    position = jnp.arange(0, max_len, dtype=jnp.float32)[:, None]          # (max_len, 1)
    div_term = jnp.exp(
        jnp.arange(0, d_model, 2, dtype=jnp.float32) * (-math.log(10000.0) / d_model)
    )                                                                       # (d_model//2,)
    pe = jnp.zeros((max_len, d_model), dtype=jnp.float32)
    pe = pe.at[:, 0::2].set(jnp.sin(position * div_term))
    pe = pe.at[:, 1::2].set(jnp.cos(position * div_term))
    return pe


def _round_up(x: int, m: int) -> int:
    return ((x + m - 1) // m) * m


def pe_gather_kernel(pos_ref, pe_ref, out_ref):
    # pos_ref: (TN, 1)        int32     in VMEM (per-tile block)
    # pe_ref:  (K_pad, D_pad) f32/bf16  in VMEM (resident, same block every step)
    # out_ref: (TN, D_pad)    f32       in VMEM (per-tile block, lane-dense)
    idx = pos_ref[...]                                    # (TN, 1)
    tn = out_ref.shape[0]
    k_pad = pe_ref.shape[0]
    # One-hot gather: (TN, K_pad) @ (K_pad, D_pad) on the MXU, f32 accumulate.
    iota = jax.lax.broadcasted_iota(jnp.int32, (tn, k_pad), 1)
    onehot = (iota == idx).astype(pe_ref.dtype)
    out_ref[...] = jnp.dot(onehot, pe_ref[...], preferred_element_type=jnp.float32)


def positional_encoding(
    pe: jnp.ndarray,
    pos: jnp.ndarray,
    *,
    tile_n: int = 512,
    use_bf16_table: bool = False,
) -> jnp.ndarray:
    """Equivalent of PositionalEncoding.forward: returns pe[pos] (f32)."""
    orig_shape = pos.shape
    max_len, d_model = pe.shape
    n = int(pos.size)

    # --- padded problem sizes -------------------------------------------------
    k_pad = _round_up(max_len, 128)     # lane-aligned contraction width
    d_pad = _round_up(d_model, 128)     # lane-dense output
    tn = min(tile_n, _round_up(max(n, 1), 8))   # tile rows (multiple of 8 sublanes)
    n_pad = _round_up(max(n, 1), tn)

    # --- padded operands ------------------------------------------------------
    table_dtype = jnp.bfloat16 if use_bf16_table else jnp.float32
    pe_padded = jnp.zeros((k_pad, d_pad), dtype=table_dtype)
    pe_padded = pe_padded.at[:max_len, :d_model].set(pe.astype(table_dtype))

    pos_flat = pos.reshape(n).astype(jnp.int32)
    pos_padded = jnp.zeros((n_pad, 1), dtype=jnp.int32)
    pos_padded = pos_padded.at[:n, 0].set(pos_flat)

    grid = (n_pad // tn,)

    out = pl.pallas_call(
        pe_gather_kernel,
        out_shape=jax.ShapeDtypeStruct((n_pad, d_pad), jnp.float32),
        grid=grid,
        in_specs=[
            pl.BlockSpec((tn, 1), lambda i: (i, 0)),          # pos tile
            pl.BlockSpec((k_pad, d_pad), lambda i: (0, 0)),   # pe table, resident
        ],
        out_specs=pl.BlockSpec((tn, d_pad), lambda i: (i, 0)),
        compiler_params=pltpu.CompilerParams(
            dimension_semantics=("parallel",),
            vmem_limit_bytes=32 * 1024 * 1024,
        ),
    )(pos_padded, pe_padded)

    # Slice away padding and restore the original index shape.
    return out[:n, :d_model].reshape(*orig_shape, d_model)


if __name__ == "__main__":
    d_model = 32
    max_len = 300
    batch, seq = 2, 8

    pe = build_pe_table(d_model, max_len)

    key = jax.random.PRNGKey(0)
    pos = jax.random.randint(key, (batch, seq), 0, max_len, dtype=jnp.int32)

    out = positional_encoding(pe, pos)
    out = jax.block_until_ready(out)

    # Reference check against plain JAX gather (same semantics as torch pe[pos]).
    ref = pe[pos]
    assert out.shape == (batch, seq, d_model), out.shape
    assert jnp.allclose(out, ref, atol=1e-6), "mismatch vs reference gather"

    print("KERNEL_OK")
</pallas_src>

<mosaic_0001>
module attributes {stable_mosaic.version = 11 : i64} {
  func.func @pe_gather_kernel(%arg0: i32, %arg1: memref<16x1xi32, #tpu.memory_space<vmem>>, %arg2: memref<384x128xf32, #tpu.memory_space<vmem>>, %arg3: memref<16x128xf32, #tpu.memory_space<vmem>>) attributes {dimension_semantics = [#tpu.dimension_semantics<parallel>], iteration_bounds = array<i64: 1>, scalar_prefetch = 0 : i64, scratch_operands = 0 : i64, tpu.core_type = #tpu.core_type<tc>, window_params = [{transform_indices = @transform_0, window_bounds = array<i64: 16, 1>}, {pipeline_mode = #tpu.pipeline_mode<synchronous>, transform_indices = @transform_1, window_bounds = array<i64: 384, 128>}, {transform_indices = @transform_2, window_bounds = array<i64: 16, 128>}]} {
    %c0 = arith.constant 0 : index
    %c0_0 = arith.constant 0 : index
    %0 = vector.load %arg1[%c0, %c0_0] : memref<16x1xi32, #tpu.memory_space<vmem>>, vector<16x1xi32>
    %1 = tpu.iota {dimensions = array<i32: 1>} : vector<16x384xi32>
    %2 = vector.broadcast %0 : vector<16x1xi32> to vector<16x384xi32>
    %3 = arith.cmpi eq, %1, %2 : vector<16x384xi32>
    %4 = arith.extui %3 : vector<16x384xi1> to vector<16x384xi32>
    %5 = arith.sitofp %4 : vector<16x384xi32> to vector<16x384xf32>
    %c0_1 = arith.constant 0 : index
    %c0_2 = arith.constant 0 : index
    %6 = vector.load %arg2[%c0_1, %c0_2] : memref<384x128xf32, #tpu.memory_space<vmem>>, vector<384x128xf32>
    %cst = arith.constant dense<0.000000e+00> : vector<16x128xf32>
    %7 = tpu.matmul %5, %6, %cst {dimension_numbers = #tpu.dot_dimension_numbers<[1], [0], [0], [1], [0, 0, 1, 1], [], []>} : vector<16x384xf32>, vector<384x128xf32>, vector<16x128xf32> -> vector<16x128xf32>
    %c0_3 = arith.constant 0 : index
    %c0_4 = arith.constant 0 : index
    %8 = vector.load %arg3[%c0_3, %c0_4] : memref<16x128xf32, #tpu.memory_space<vmem>>, vector<16x128xf32>
    tpu.vector_store %arg3[%c0_3, %c0_4], %7 {strides = array<i32>} : memref<16x128xf32, #tpu.memory_space<vmem>>, vector<16x128xf32>,
    return
  }
  func.func @transform_0(%arg0: i32) -> (i32, i32) {
    %c0_i32 = arith.constant 0 : i32
    %c0_i32_0 = arith.constant 0 : i32
    return %arg0, %c0_i32 : i32, i32
  }
  func.func @transform_1(%arg0: i32) -> (i32, i32) {
    %c0_i32 = arith.constant 0 : i32
    %c0_i32_0 = arith.constant 0 : i32
    %c0_i32_1 = arith.constant 0 : i32
    return %c0_i32, %c0_i32_0 : i32, i32
  }
  func.func @transform_2(%arg0: i32) -> (i32, i32) {
    %c0_i32 = arith.constant 0 : i32
    %c0_i32_0 = arith.constant 0 : i32
    return %arg0, %c0_i32 : i32, i32
  }
}

</mosaic_0001>

<llo_original>
// kernel: tpu_custom_call.1
$region0: #{tpu_custom_call.1}
  #allocation0 [shape = 'u32[]', space=smem, size = 0x4, offset = 0x4, fixed_abs, tag = 'smem constant byte address 0x4 - core index']
  #allocation1 [shape = 'u32[144,128]{1,0:T(1,128)}', space=vmem, size = 0x12000, scoped, tag = 'internal scratch']
  %s0 = inlined_call_operand.vmem [shape: s32[16,1], index: 0, kind: input, shape index: {}]
  %s1 = inlined_call_operand.hbm [shape: f32[384,128], index: 1, kind: input, shape index: {}]
  %s2 = inlined_call_operand.hbm [shape: f32[16,128], index: 2, kind: output, shape index: {}]
  %s3 = sld [smem:[#allocation0]]
  $region22: #{tpu_custom_call.1} parent=0
    _
  %s5 = ssub.s32 1, %s3
  %s6 = scalar_select 0, %s5, %s3
  $region1: #{tpu_custom_call.1} parent=0
    #allocation2 [shape = 'u8[196608]{0}', space=vmem, size = 0x30000, scoped, tag = 'input window, operand 1, single buffered']
    #allocation3 [shape = 's32[1]{0}', space=sflag, size = 0x4, scoped, tag = 'scoped memory for tpu_custom_call.1']
    #allocation4 [shape = 's32[1]{0}', space=sflag, size = 0x4, scoped, tag = 'scoped memory for tpu_custom_call.1']
    #allocation5 [shape = 'u8[8192]{0}', space=vmem, size = 0x2000, scoped, tag = 'output window, operand 0, single buffered']
    %7 = vsyncpa [#allocation3], 0
    %8 = vsyncpa [#allocation4], 0
    // Predicated region
    $region2: #{tpu_custom_call.1} parent=1 // pred_check
      _
    $region3: #{tpu_custom_call.1} parent=1 // pred_check_branch
      %10 = sbr.rel (0) target = $region5
    $region4: #{tpu_custom_call.1} parent=1 // pred_region
      _
    $region5: #{tpu_custom_call.1} parent=1 // pred_fallthru
      _
    // Predicated region
    $region6: #{tpu_custom_call.1} parent=1 // pred_check
      _
    $region7: #{tpu_custom_call.1} parent=1 // pred_check_branch
      %12 = sbr.rel (0) target = $region9
    $region8: #{tpu_custom_call.1} parent=1 // pred_region
      %s14 = ssub.s32 6144, 6144
      %15 = vsyncadd [#allocation3], %s14
      %s16 = sshll.u32 [#allocation2], 4
      %s17 = int_to_ptr.vmem [resolvable:$true] %s16
      %22 = dma.hbm_to_vmem [thread:$0]  %s1, 6144, %s17, [#allocation3], 128, 128, 8
    $region9: #{tpu_custom_call.1} parent=1 // pred_fallthru
      _
    // Predicated region
    $region10: #{tpu_custom_call.1} parent=1 // pred_check
      _
    $region11: #{tpu_custom_call.1} parent=1 // pred_check_branch
      %24 = sbr.rel (0) target = $region13
    $region12: #{tpu_custom_call.1} parent=1 // pred_region
      %25 = dma.done [#allocation3], 6144
    $region13: #{tpu_custom_call.1} parent=1 // pred_fallthru
      _
    %v26 = vld [vmem:[%s0] sm:$0xff]
    %v27 = vld [vmem:[%s0 + $0x8] sm:$0xff]
    %v28 = vlaneseq
    %v29 = vand.u32 %v28, 127
    %v30 = vadd.s32 %v29, 128
    %v31 = vadd.s32 %v29, 256
    %32 = vset.pattern.permute.xlu0 0
    %33 = vperm.xlu0 %32, %v26
    %v34 = vpop.permute.xlu0 %33
    %35 = vset.pattern.permute.xlu0 0
    %36 = vperm.xlu0 %35, %v27
    %v37 = vpop.permute.xlu0 %36
    %vm38 = vcmp.eq.s32.totalorder %v29, %v34
    %vm39 = vcmp.eq.s32.totalorder %v30, %v34
    %vm40 = vcmp.eq.s32.totalorder %v31, %v34
    %vm41 = vcmp.eq.s32.totalorder %v29, %v37
    %vm42 = vcmp.eq.s32.totalorder %v30, %v37
    %vm43 = vcmp.eq.s32.totalorder %v31, %v37
    %v44 = vsel %vm38, 1, 0
    %v45 = vsel %vm39, 1, 0
    %v46 = vsel %vm40, 1, 0
    %v47 = vsel %vm41, 1, 0
    %v48 = vsel %vm42, 1, 0
    %v49 = vsel %vm43, 1, 0
    %v50 = vcvt.s32.f32 %v44
    %v51 = vcvt.s32.f32 %v45
    %v52 = vcvt.s32.f32 %v46
    %v53 = vcvt.s32.f32 %v47
    %v54 = vcvt.s32.f32 %v48
    %v55 = vcvt.s32.f32 %v49
    %v56 = vld [vmem:[#allocation2] sm:$0xff]
    %v57 = vld [vmem:[#allocation2 + $0x8] sm:$0xff]
    %v58 = vld [vmem:[#allocation2 + $0x10] sm:$0xff]
    %v59 = vld [vmem:[#allocation2 + $0x18] sm:$0xff]
    %v60 = vld [vmem:[#allocation2 + $0x20] sm:$0xff]
    %v61 = vld [vmem:[#allocation2 + $0x28] sm:$0xff]
    %v62 = vld [vmem:[#allocation2 + $0x30] sm:$0xff]
    %v63 = vld [vmem:[#allocation2 + $0x38] sm:$0xff]
    %v64 = vld [vmem:[#allocation2 + $0x40] sm:$0xff]
    %v65 = vld [vmem:[#allocation2 + $0x48] sm:$0xff]
    %v66 = vld [vmem:[#allocation2 + $0x50] sm:$0xff]
    %v67 = vld [vmem:[#allocation2 + $0x58] sm:$0xff]
    %v68 = vld [vmem:[#allocation2 + $0x60] sm:$0xff]
    %v69 = vld [vmem:[#allocation2 + $0x68] sm:$0xff]
    %v70 = vld [vmem:[#allocation2 + $0x70] sm:$0xff]
    %v71 = vld [vmem:[#allocation2 + $0x78] sm:$0xff]
    %v72 = vld [vmem:[#allocation2 + $0x80] sm:$0xff]
    %v73 = vld [vmem:[#allocation2 + $0x88] sm:$0xff]
    %v74 = vld [vmem:[#allocation2 + $0x90] sm:$0xff]
    %v75 = vld [vmem:[#allocation2 + $0x98] sm:$0xff]
    %v76 = vld [vmem:[#allocation2 + $0xa0] sm:$0xff]
    %v77 = vld [vmem:[#allocation2 + $0xa8] sm:$0xff]
    %v78 = vld [vmem:[#allocation2 + $0xb0] sm:$0xff]
    %v79 = vld [vmem:[#allocation2 + $0xb8] sm:$0xff]
    %v80 = vld [vmem:[#allocation2 + $0xc0] sm:$0xff]
    %v81 = vld [vmem:[#allocation2 + $0xc8] sm:$0xff]
    %v82 = vld [vmem:[#allocation2 + $0xd0] sm:$0xff]
    %v83 = vld [vmem:[#allocation2 + $0xd8] sm:$0xff]
    %v84 = vld [vmem:[#allocation2 + $0xe0] sm:$0xff]
    %v85 = vld [vmem:[#allocation2 + $0xe8] sm:$0xff]
    %v86 = vld [vmem:[#allocation2 + $0xf0] sm:$0xff]
    %v87 = vld [vmem:[#allocation2 + $0xf8] sm:$0xff]
    %v88 = vld [vmem:[#allocation2 + $0x100] sm:$0xff]
    %v89 = vld [vmem:[#allocation2 + $0x108] sm:$0xff]
    %v90 = vld [vmem:[#allocation2 + $0x110] sm:$0xff]
    %v91 = vld [vmem:[#allocation2 + $0x118] sm:$0xff]
    %v92 = vld [vmem:[#allocation2 + $0x120] sm:$0xff]
    %v93 = vld [vmem:[#allocation2 + $0x128] sm:$0xff]
    %v94 = vld [vmem:[#allocation2 + $0x130] sm:$0xff]
    %v95 = vld [vmem:[#allocation2 + $0x138] sm:$0xff]
    %v96 = vld [vmem:[#allocation2 + $0x140] sm:$0xff]
    %v97 = vld [vmem:[#allocation2 + $0x148] sm:$0xff]
    %v98 = vld [vmem:[#allocation2 + $0x150] sm:$0xff]
    %v99 = vld [vmem:[#allocation2 + $0x158] sm:$0xff]
    %v100 = vld [vmem:[#allocation2 + $0x160] sm:$0xff]
    %v101 = vld [vmem:[#allocation2 + $0x168] sm:$0xff]
    %v102 = vld [vmem:[#allocation2 + $0x170] sm:$0xff]
    %v103 = vld [vmem:[#allocation2 + $0x178] sm:$0xff]
    %104 = vmatprep.subr.mxu0 0.0
    %105 = vmatpush1.msra.mxu0 %v56
    %106 = vmatprep.subr.mxu0 0.0
    %107 = vmatpush1.msra.mxu0 %v57
    %108 = vmatprep.subr.mxu0 0.0
    %109 = vmatpush1.msra.mxu0 %v58
    %110 = vmatprep.subr.mxu0 0.0
    %111 = vmatpush1.msra.mxu0 %v59
    %112 = vmatprep.subr.mxu0 0.0
    %113 = vmatpush1.msra.mxu0 %v60
    %114 = vmatprep.subr.mxu0 0.0
    %115 = vmatpush1.msra.mxu0 %v61
    %116 = vmatprep.subr.mxu0 0.0
    %117 = vmatpush1.msra.mxu0 %v62
    %118 = vmatprep.subr.mxu0 0.0
    %119 = vmatpush1.msra.mxu0 %v63
    %120 = vmatprep.subr.mxu0 0.0
    %121 = vmatpush1.msra.mxu0 %v64
    %122 = vmatprep.subr.mxu0 0.0
    %123 = vmatpush1.msra.mxu0 %v65
    %124 = vmatprep.subr.mxu0 0.0
    %125 = vmatpush1.msra.mxu0 %v66
    %126 = vmatprep.subr.mxu0 0.0
    %127 = vmatpush1.msra.mxu0 %v67
    %128 = vmatprep.subr.mxu0 0.0
    %129 = vmatpush1.msra.mxu0 %v68
    %130 = vmatprep.subr.mxu0 0.0
    %131 = vmatpush1.msra.mxu0 %v69
    %132 = vmatprep.subr.mxu0 0.0
    %133 = vmatpush1.msra.mxu0 %v70
    %134 = vmatprep.subr.mxu0 0.0
    %135 = vmatpush1.msra.mxu0 %v71
    %136 = vmatprep.subr.mxu0 0.0
    %137 = vmatpush1.msra.mxu0 %v72
    %138 = vmatprep.subr.mxu0 0.0
    %139 = vmatpush1.msra.mxu0 %v73
    %140 = vmatprep.subr.mxu0 0.0
    %141 = vmatpush1.msra.mxu0 %v74
    %142 = vmatprep.subr.mxu0 0.0
    %143 = vmatpush1.msra.mxu0 %v75
    %144 = vmatprep.subr.mxu0 0.0
    %145 = vmatpush1.msra.mxu0 %v76
    %146 = vmatprep.subr.mxu0 0.0
    %147 = vmatpush1.msra.mxu0 %v77
    %148 = vmatprep.subr.mxu0 0.0
    %149 = vmatpush1.msra.mxu0 %v78
    %150 = vmatprep.subr.mxu0 0.0
    %151 = vmatpush1.msra.mxu0 %v79
    %152 = vmatprep.subr.mxu0 0.0
    %153 = vmatpush1.msra.mxu0 %v80
    %154 = vmatprep.subr.mxu0 0.0
    %155 = vmatpush1.msra.mxu0 %v81
    %156 = vmatprep.subr.mxu0 0.0
    %157 = vmatpush1.msra.mxu0 %v82
    %158 = vmatprep.subr.mxu0 0.0
    %159 = vmatpush1.msra.mxu0 %v83
    %160 = vmatprep.subr.mxu0 0.0
    %161 = vmatpush1.msra.mxu0 %v84
    %162 = vmatprep.subr.mxu0 0.0
    %163 = vmatpush1.msra.mxu0 %v85
    %164 = vmatprep.subr.mxu0 0.0
    %165 = vmatpush1.msra.mxu0 %v86
    %166 = vmatprep.subr.mxu0 0.0
    %167 = vmatpush1.msra.mxu0 %v87
    %168 = vmatprep.mubr.f32.mxu0 %v51
    %169 = vmatmul.mubr.f32.gmra.mrb[0].mxu0 %v50
    %v170 = vpop.f32.mrb[0].mxu0
    %v171 = vadd.f32 0.0, %v170
    %v172 = vpop.f32.mrb[0].mxu0
    %173 = vmatprep.mubr.f32.mxu0 %v54
    %174 = vmatmul.mubr.f32.gmra.mrb[0].mxu0 %v53
    %v175 = vpop.f32.mrb[0].mxu0
    %v176 = vadd.f32 0.0, %v175
    %v177 = vpop.f32.mrb[0].mxu0
    %178 = vdwg.mxu0
    %179 = vmatprep.subr.mxu0 0.0
    %180 = vmatpush1.msra.mxu0 %v88
    %181 = vmatprep.subr.mxu0 0.0
    %182 = vmatpush1.msra.mxu0 %v89
    %183 = vmatprep.subr.mxu0 0.0
    %184 = vmatpush1.msra.mxu0 %v90
    %185 = vmatprep.subr.mxu0 0.0
    %186 = vmatpush1.msra.mxu0 %v91
    %187 = vmatprep.subr.mxu0 0.0
    %188 = vmatpush1.msra.mxu0 %v92
    %189 = vmatprep.subr.mxu0 0.0
    %190 = vmatpush1.msra.mxu0 %v93
    %191 = vmatprep.subr.mxu0 0.0
    %192 = vmatpush1.msra.mxu0 %v94
    %193 = vmatprep.subr.mxu0 0.0
    %194 = vmatpush1.msra.mxu0 %v95
    %195 = vmatprep.subr.mxu0 0.0
    %196 = vmatpush1.msra.mxu0 %v96
    %197 = vmatprep.subr.mxu0 0.0
    %198 = vmatpush1.msra.mxu0 %v97
    %199 = vmatprep.subr.mxu0 0.0
    %200 = vmatpush1.msra.mxu0 %v98
    %201 = vmatprep.subr.mxu0 0.0
    %202 = vmatpush1.msra.mxu0 %v99
    %203 = vmatprep.subr.mxu0 0.0
    %204 = vmatpush1.msra.mxu0 %v100
    %205 = vmatprep.subr.mxu0 0.0
    %206 = vmatpush1.msra.mxu0 %v101
    %207 = vmatprep.subr.mxu0 0.0
    %208 = vmatpush1.msra.mxu0 %v102
    %209 = vmatprep.subr.mxu0 0.0
    %210 = vmatpush1.msra.mxu0 %v103
    %211 = vmatprep.subr.mxu0 0.0
    %212 = vmatpush1.msra.mxu0 0.0
    %213 = vmatprep.subr.mxu0 0.0
    %214 = vmatpush1.msra.mxu0 0.0
    %215 = vmatprep.subr.mxu0 0.0
    %216 = vmatpush1.msra.mxu0 0.0
    %217 = vmatprep.subr.mxu0 0.0
    %218 = vmatpush1.msra.mxu0 0.0
    %219 = vmatprep.subr.mxu0 0.0
    %220 = vmatpush1.msra.mxu0 0.0
    %221 = vmatprep.subr.mxu0 0.0
    %222 = vmatpush1.msra.mxu0 0.0
    %223 = vmatprep.subr.mxu0 0.0
    %224 = vmatpush1.msra.mxu0 0.0
    %225 = vmatprep.subr.mxu0 0.0
    %226 = vmatpush1.msra.mxu0 0.0
    %227 = vmatprep.subr.mxu0 0.0
    %228 = vmatpush1.msra.mxu0 0.0
    %229 = vmatprep.subr.mxu0 0.0
    %230 = vmatpush1.msra.mxu0 0.0
    %231 = vmatprep.subr.mxu0 0.0
    %232 = vmatpush1.msra.mxu0 0.0
    %233 = vmatprep.subr.mxu0 0.0
    %234 = vmatpush1.msra.mxu0 0.0
    %235 = vmatprep.subr.mxu0 0.0
    %236 = vmatpush1.msra.mxu0 0.0
    %237 = vmatprep.subr.mxu0 0.0
    %238 = vmatpush1.msra.mxu0 0.0
    %239 = vmatprep.subr.mxu0 0.0
    %240 = vmatpush1.msra.mxu0 0.0
    %241 = vmatprep.subr.mxu0 0.0
    %242 = vmatpush1.msra.mxu0 0.0
    %243 = vmatprep.mubr.f32.mxu0 0.0
    %244 = vmatmul.mubr.f32.gmra.mrb[0].mxu0 %v52
    %v245 = vpop.f32.mrb[0].mxu0
    %v246 = vadd.f32 %v171, %v245
    %v247 = vpop.f32.mrb[0].mxu0
    %248 = vmatprep.mubr.f32.mxu0 0.0
    %249 = vmatmul.mubr.f32.gmra.mrb[0].mxu0 %v55
    %v250 = vpop.f32.mrb[0].mxu0
    %v251 = vadd.f32 %v176, %v250
    %v252 = vpop.f32.mrb[0].mxu0
    %253 = vdwg.mxu0
    %254 = vst [vmem:[#allocation5] sm:$0xff] %v246
    %255 = vst [vmem:[#allocation5 + $0x8] sm:$0xff] %v251
    // Predicated region
    $region14: #{tpu_custom_call.1} parent=1 // pred_check
      _
    $region15: #{tpu_custom_call.1} parent=1 // pred_check_branch
      %257 = sbr.rel (0) target = $region17
    $region16: #{tpu_custom_call.1} parent=1 // pred_region
      %s259 = ssub.s32 256, 256
      %260 = vsyncadd [#allocation4], %s259
      %s261 = sshll.u32 [#allocation5], 4
      %s262 = int_to_ptr.vmem [resolvable:$true] %s261
      %267 = dma.vmem_to_hbm [thread:$0]  %s262, 256, %s2, [#allocation4], 128, 128, 8
    $region17: #{tpu_custom_call.1} parent=1 // pred_fallthru
      _
    // Predicated region
    $region18: #{tpu_custom_call.1} parent=1 // pred_check
      _
    $region19: #{tpu_custom_call.1} parent=1 // pred_check_branch
      %269 = sbr.rel (0) target = $region21
    $region20: #{tpu_custom_call.1} parent=1 // pred_region
      %270 = dma.done [#allocation4], 256
    $region21: #{tpu_custom_call.1} parent=1 // pred_fallthru
      _
    %271 = vsyncpa [#allocation3], 1
    %272 = vsyncpa [#allocation4], 1

</llo_original>
